<compile_context>
chip_gen: v5e
topology: v5e:2x2
jax: 0.10.0
libtpu: 0.0.40
codegen_flags: <defaults>
</compile_context>

<pallas_src>
import jax
import jax.numpy as jnp
from jax import lax
from jax.experimental import pallas as pl
from jax.experimental.pallas import tpu as pltpu


def lstm_tagger_kernel(embeds_ref, wih_ref, whh_ref, b_ref, wtag_ref, btag_ref,
                       out_ref, hs_ref, xproj_ref):
    # embeds_ref : (S, E)
    # wih_ref    : (E, 4H)   fused input->gate weights, gate order i,f,g,o
    # whh_ref    : (H, 4H)   fused hidden->gate weights
    # b_ref      : (1, 4H)   b_ih + b_hh
    # wtag_ref   : (H, T)    hidden->tag weights (transposed)
    # btag_ref   : (1, T)
    # out_ref    : (S, T)
    # hs_ref     : (S, H)    scratch: all hidden states (for the final projection)
    # xproj_ref  : (S, 4H)   scratch: precomputed input projection
    S = embeds_ref.shape[0]
    H = whh_ref.shape[0]

    # Hoisted input projection: one well-shaped matmul, off the critical path.
    xproj_ref[...] = (
        jnp.dot(embeds_ref[...], wih_ref[...], preferred_element_type=jnp.float32)
        + b_ref[...]
    )

    # Fused recurrent weights stay register-resident for the whole recurrence
    # ((32, 128) f32 == 4 vregs).
    whh = whh_ref[...]

    h0 = jnp.zeros((1, H), dtype=jnp.float32)
    c0 = jnp.zeros((1, H), dtype=jnp.float32)

    def step(t, carry):
        h_prev, c_prev = carry
        # Single MXU push per step: (1, H) x (H, 4H) -> (1, 4H), lane-dense.
        gates = xproj_ref[pl.ds(t, 1), :] + jnp.dot(
            h_prev, whh, preferred_element_type=jnp.float32)          # (1, 4H)

        i_g = jax.nn.sigmoid(gates[:, 0:H])
        f_g = jax.nn.sigmoid(gates[:, H:2 * H])
        g_g = jnp.tanh(gates[:, 2 * H:3 * H])
        o_g = jax.nn.sigmoid(gates[:, 3 * H:4 * H])

        c_new = f_g * c_prev + i_g * g_g
        h_new = o_g * jnp.tanh(c_new)

        hs_ref[pl.ds(t, 1), :] = h_new
        return (h_new, c_new)

    # Short static trip count -> fully unroll for cross-iteration scheduling.
    lax.fori_loop(0, S, step, (h0, c0), unroll=True)

    # hidden2tag + numerically-stable log_softmax over tag dim.
    tag_space = (
        jnp.dot(hs_ref[...], wtag_ref[...], preferred_element_type=jnp.float32)
        + btag_ref[...]
    )                                                                   # (S, T)
    m = jnp.max(tag_space, axis=1, keepdims=True)
    z = tag_space - m
    lse = jnp.log(jnp.sum(jnp.exp(z), axis=1, keepdims=True))
    out_ref[...] = z - lse


def lstm_tagger_forward(sentence, params):
    emb_table, wih_fused, whh_fused, b_fused, wtag_t, btag = params
    S = sentence.shape[0]
    H = whh_fused.shape[0]
    T = wtag_t.shape[1]

    embeds = jnp.take(emb_table, sentence, axis=0)            # (S, E) gather (glue)

    return pl.pallas_call(
        lstm_tagger_kernel,
        out_shape=jax.ShapeDtypeStruct((S, T), jnp.float32),
        in_specs=[pl.BlockSpec(memory_space=pltpu.MemorySpace.VMEM)] * 6,
        out_specs=pl.BlockSpec(memory_space=pltpu.MemorySpace.VMEM),
        scratch_shapes=[
            pltpu.VMEM((S, H), jnp.float32),      # hidden states for hidden2tag
            pltpu.VMEM((S, 4 * H), jnp.float32),  # hoisted input projection
        ],
    )(embeds, wih_fused, whh_fused, b_fused, wtag_t, btag)


def init_params(key, embedding_dim, hidden_dim, vocab_size, tagset_size):
    E, H, V, T = embedding_dim, hidden_dim, vocab_size, tagset_size
    ks = jax.random.split(key, 8)
    bound = 1.0 / jnp.sqrt(jnp.float32(H))

    emb_table = jax.random.normal(ks[0], (V, E), dtype=jnp.float32)

    # PyTorch nn.LSTM stores weight_ih_l0 (4H, E), weight_hh_l0 (4H, H),
    # biases (4H,), gate order i,f,g,o.  Transposing keeps that order along
    # the fused 4H lane dimension: columns [0:H]=i, [H:2H]=f, [2H:3H]=g, [3H:4H]=o.
    w_ih = jax.random.uniform(ks[1], (4 * H, E), minval=-bound, maxval=bound)
    w_hh = jax.random.uniform(ks[2], (4 * H, H), minval=-bound, maxval=bound)
    b_ih = jax.random.uniform(ks[3], (4 * H,), minval=-bound, maxval=bound)
    b_hh = jax.random.uniform(ks[4], (4 * H,), minval=-bound, maxval=bound)

    wih_fused = w_ih.T                                   # (E, 4H)
    whh_fused = w_hh.T                                   # (H, 4H)
    b_fused = (b_ih + b_hh).reshape(1, 4 * H)            # (1, 4H)

    w_tag = jax.random.uniform(ks[5], (T, H), minval=-bound, maxval=bound)
    b_tag = jax.random.uniform(ks[6], (T,), minval=-bound, maxval=bound)
    wtag_t = w_tag.T                                     # (H, T)
    btag = b_tag.reshape(1, T)                           # (1, T)

    return (emb_table.astype(jnp.float32),
            wih_fused.astype(jnp.float32),
            whh_fused.astype(jnp.float32),
            b_fused.astype(jnp.float32),
            wtag_t.astype(jnp.float32),
            btag.astype(jnp.float32))


if __name__ == "__main__":
    EMBEDDING_DIM = 32
    HIDDEN_DIM = 32        # 4H = 128 -> lane-dense fused gates
    VOCAB_SIZE = 50
    TAGSET_SIZE = 8
    SEQ_LEN = 8

    key = jax.random.PRNGKey(0)
    pkey, skey = jax.random.split(key)
    params = init_params(pkey, EMBEDDING_DIM, HIDDEN_DIM, VOCAB_SIZE, TAGSET_SIZE)
    sentence = jax.random.randint(skey, (SEQ_LEN,), 0, VOCAB_SIZE, dtype=jnp.int32)

    tag_scores = lstm_tagger_forward(sentence, params)
    jax.block_until_ready(tag_scores)

    assert tag_scores.shape == (SEQ_LEN, TAGSET_SIZE)
    # log_softmax rows should sum to ~1 after exp
    row_sums = jnp.sum(jnp.exp(tag_scores), axis=1)
    assert bool(jnp.all(jnp.abs(row_sums - 1.0) < 1e-4))
    print("KERNEL_OK")
</pallas_src>

<mosaic_0001>
module attributes {stable_mosaic.version = 11 : i64} {
  func.func @lstm_tagger_kernel(%arg0: memref<8x32xf32, #tpu.memory_space<vmem>>, %arg1: memref<32x128xf32, #tpu.memory_space<vmem>>, %arg2: memref<32x128xf32, #tpu.memory_space<vmem>>, %arg3: memref<1x128xf32, #tpu.memory_space<vmem>>, %arg4: memref<32x8xf32, #tpu.memory_space<vmem>>, %arg5: memref<1x8xf32, #tpu.memory_space<vmem>>, %arg6: memref<8x8xf32, #tpu.memory_space<vmem>>, %arg7: memref<8x32xf32, #tpu.memory_space<vmem>>, %arg8: memref<8x128xf32, #tpu.memory_space<vmem>>) attributes {dimension_semantics = [], scalar_prefetch = 0 : i64, scratch_operands = 2 : i64, tpu.core_type = #tpu.core_type<tc>} {
    %c0 = arith.constant 0 : index
    %c0_0 = arith.constant 0 : index
    %0 = vector.load %arg0[%c0, %c0_0] : memref<8x32xf32, #tpu.memory_space<vmem>>, vector<8x32xf32>
    %c0_1 = arith.constant 0 : index
    %c0_2 = arith.constant 0 : index
    %1 = vector.load %arg1[%c0_1, %c0_2] : memref<32x128xf32, #tpu.memory_space<vmem>>, vector<32x128xf32>
    %cst = arith.constant dense<0.000000e+00> : vector<8x128xf32>
    %2 = tpu.matmul %0, %1, %cst {dimension_numbers = #tpu.dot_dimension_numbers<[1], [0], [0], [1], [0, 0, 1, 1], [], []>} : vector<8x32xf32>, vector<32x128xf32>, vector<8x128xf32> -> vector<8x128xf32>
    %c0_3 = arith.constant 0 : index
    %c0_4 = arith.constant 0 : index
    %3 = vector.load %arg3[%c0_3, %c0_4] : memref<1x128xf32, #tpu.memory_space<vmem>>, vector<1x128xf32>
    %4 = vector.broadcast %3 : vector<1x128xf32> to vector<8x128xf32>
    %5 = arith.addf %2, %4 : vector<8x128xf32>
    %c0_5 = arith.constant 0 : index
    %c0_6 = arith.constant 0 : index
    %6 = vector.load %arg8[%c0_5, %c0_6] : memref<8x128xf32, #tpu.memory_space<vmem>>, vector<8x128xf32>
    tpu.vector_store %arg8[%c0_5, %c0_6], %5 {strides = array<i32>} : memref<8x128xf32, #tpu.memory_space<vmem>>, vector<8x128xf32>,
    %c0_7 = arith.constant 0 : index
    %c0_8 = arith.constant 0 : index
    %7 = vector.load %arg2[%c0_7, %c0_8] : memref<32x128xf32, #tpu.memory_space<vmem>>, vector<32x128xf32>
    %cst_9 = arith.constant 0.000000e+00 : f32
    %8 = vector.broadcast %cst_9 : f32 to vector<1x32xf32>
    %cst_10 = arith.constant 0.000000e+00 : f32
    %9 = vector.broadcast %cst_10 : f32 to vector<1x32xf32>
    %c0_i32 = arith.constant 0 : i32
    %10 = arith.index_cast %c0_i32 : i32 to index
    %c0_11 = arith.constant 0 : index
    %11 = vector.load %arg8[%10, %c0_11] : memref<8x128xf32, #tpu.memory_space<vmem>>, vector<1x128xf32>
    %cst_12 = arith.constant dense<0.000000e+00> : vector<1x128xf32>
    %12 = tpu.matmul %8, %7, %cst_12 {dimension_numbers = #tpu.dot_dimension_numbers<[1], [0], [0], [1], [0, 0, 1, 1], [], []>} : vector<1x32xf32>, vector<32x128xf32>, vector<1x128xf32> -> vector<1x128xf32>
    %13 = arith.addf %11, %12 : vector<1x128xf32>
    %14 = vector.extract_strided_slice %13 {offsets = [0, 0], sizes = [1, 32], strides = [1, 1]} : vector<1x128xf32> to vector<1x32xf32>
    %15 = arith.negf %14 : vector<1x32xf32>
    %16 = math.exp %15 : vector<1x32xf32>
    %cst_13 = arith.constant 1.000000e+00 : f32
    %17 = vector.broadcast %cst_13 : f32 to vector<1x32xf32>
    %18 = arith.addf %17, %16 : vector<1x32xf32>
    %19 = arith.divf %17, %18 : vector<1x32xf32>
    %20 = vector.extract_strided_slice %13 {offsets = [0, 32], sizes = [1, 32], strides = [1, 1]} : vector<1x128xf32> to vector<1x32xf32>
    %21 = arith.negf %20 : vector<1x32xf32>
    %22 = math.exp %21 : vector<1x32xf32>
    %cst_14 = arith.constant 1.000000e+00 : f32
    %23 = vector.broadcast %cst_14 : f32 to vector<1x32xf32>
    %24 = arith.addf %23, %22 : vector<1x32xf32>
    %25 = arith.divf %23, %24 : vector<1x32xf32>
    %26 = vector.extract_strided_slice %13 {offsets = [0, 64], sizes = [1, 32], strides = [1, 1]} : vector<1x128xf32> to vector<1x32xf32>
    %27 = math.tanh %26 : vector<1x32xf32>
    %28 = vector.extract_strided_slice %13 {offsets = [0, 96], sizes = [1, 32], strides = [1, 1]} : vector<1x128xf32> to vector<1x32xf32>
    %29 = arith.negf %28 : vector<1x32xf32>
    %30 = math.exp %29 : vector<1x32xf32>
    %cst_15 = arith.constant 1.000000e+00 : f32
    %31 = vector.broadcast %cst_15 : f32 to vector<1x32xf32>
    %32 = arith.addf %31, %30 : vector<1x32xf32>
    %33 = arith.divf %31, %32 : vector<1x32xf32>
    %34 = arith.mulf %25, %9 : vector<1x32xf32>
    %35 = arith.mulf %19, %27 : vector<1x32xf32>
    %36 = arith.addf %34, %35 : vector<1x32xf32>
    %37 = math.tanh %36 : vector<1x32xf32>
    %38 = arith.mulf %33, %37 : vector<1x32xf32>
    %39 = arith.index_cast %c0_i32 : i32 to index
    %c0_16 = arith.constant 0 : index
    %40 = vector.load %arg7[%39, %c0_16] : memref<8x32xf32, #tpu.memory_space<vmem>>, vector<1x32xf32>
    tpu.vector_store %arg7[%39, %c0_16], %38 {strides = array<i32>} : memref<8x32xf32, #tpu.memory_space<vmem>>, vector<1x32xf32>,
    %c1_i32 = arith.constant 1 : i32
    %41 = arith.index_cast %c1_i32 : i32 to index
    %c0_17 = arith.constant 0 : index
    %42 = vector.load %arg8[%41, %c0_17] : memref<8x128xf32, #tpu.memory_space<vmem>>, vector<1x128xf32>
    %cst_18 = arith.constant dense<0.000000e+00> : vector<1x128xf32>
    %43 = tpu.matmul %38, %7, %cst_18 {dimension_numbers = #tpu.dot_dimension_numbers<[1], [0], [0], [1], [0, 0, 1, 1], [], []>} : vector<1x32xf32>, vector<32x128xf32>, vector<1x128xf32> -> vector<1x128xf32>
    %44 = arith.addf %42, %43 : vector<1x128xf32>
    %45 = vector.extract_strided_slice %44 {offsets = [0, 0], sizes = [1, 32], strides = [1, 1]} : vector<1x128xf32> to vector<1x32xf32>
    %46 = arith.negf %45 : vector<1x32xf32>
    %47 = math.exp %46 : vector<1x32xf32>
    %cst_19 = arith.constant 1.000000e+00 : f32
    %48 = vector.broadcast %cst_19 : f32 to vector<1x32xf32>
    %49 = arith.addf %48, %47 : vector<1x32xf32>
    %50 = arith.divf %48, %49 : vector<1x32xf32>
    %51 = vector.extract_strided_slice %44 {offsets = [0, 32], sizes = [1, 32], strides = [1, 1]} : vector<1x128xf32> to vector<1x32xf32>
    %52 = arith.negf %51 : vector<1x32xf32>
    %53 = math.exp %52 : vector<1x32xf32>
    %cst_20 = arith.constant 1.000000e+00 : f32
    %54 = vector.broadcast %cst_20 : f32 to vector<1x32xf32>
    %55 = arith.addf %54, %53 : vector<1x32xf32>
    %56 = arith.divf %54, %55 : vector<1x32xf32>
    %57 = vector.extract_strided_slice %44 {offsets = [0, 64], sizes = [1, 32], strides = [1, 1]} : vector<1x128xf32> to vector<1x32xf32>
    %58 = math.tanh %57 : vector<1x32xf32>
    %59 = vector.extract_strided_slice %44 {offsets = [0, 96], sizes = [1, 32], strides = [1, 1]} : vector<1x128xf32> to vector<1x32xf32>
    %60 = arith.negf %59 : vector<1x32xf32>
    %61 = math.exp %60 : vector<1x32xf32>
    %cst_21 = arith.constant 1.000000e+00 : f32
    %62 = vector.broadcast %cst_21 : f32 to vector<1x32xf32>
    %63 = arith.addf %62, %61 : vector<1x32xf32>
    %64 = arith.divf %62, %63 : vector<1x32xf32>
    %65 = arith.mulf %56, %36 : vector<1x32xf32>
    %66 = arith.mulf %50, %58 : vector<1x32xf32>
    %67 = arith.addf %65, %66 : vector<1x32xf32>
    %68 = math.tanh %67 : vector<1x32xf32>
    %69 = arith.mulf %64, %68 : vector<1x32xf32>
    %70 = arith.index_cast %c1_i32 : i32 to index
    %c0_22 = arith.constant 0 : index
    %71 = vector.load %arg7[%70, %c0_22] : memref<8x32xf32, #tpu.memory_space<vmem>>, vector<1x32xf32>
    tpu.vector_store %arg7[%70, %c0_22], %69 {strides = array<i32>} : memref<8x32xf32, #tpu.memory_space<vmem>>, vector<1x32xf32>,
    %c2_i32 = arith.constant 2 : i32
    %72 = arith.index_cast %c2_i32 : i32 to index
    %c0_23 = arith.constant 0 : index
    %73 = vector.load %arg8[%72, %c0_23] : memref<8x128xf32, #tpu.memory_space<vmem>>, vector<1x128xf32>
    %cst_24 = arith.constant dense<0.000000e+00> : vector<1x128xf32>
    %74 = tpu.matmul %69, %7, %cst_24 {dimension_numbers = #tpu.dot_dimension_numbers<[1], [0], [0], [1], [0, 0, 1, 1], [], []>} : vector<1x32xf32>, vector<32x128xf32>, vector<1x128xf32> -> vector<1x128xf32>
    %75 = arith.addf %73, %74 : vector<1x128xf32>
    %76 = vector.extract_strided_slice %75 {offsets = [0, 0], sizes = [1, 32], strides = [1, 1]} : vector<1x128xf32> to vector<1x32xf32>
    %77 = arith.negf %76 : vector<1x32xf32>
    %78 = math.exp %77 : vector<1x32xf32>
    %cst_25 = arith.constant 1.000000e+00 : f32
    %79 = vector.broadcast %cst_25 : f32 to vector<1x32xf32>
    %80 = arith.addf %79, %78 : vector<1x32xf32>
    %81 = arith.divf %79, %80 : vector<1x32xf32>
    %82 = vector.extract_strided_slice %75 {offsets = [0, 32], sizes = [1, 32], strides = [1, 1]} : vector<1x128xf32> to vector<1x32xf32>
    %83 = arith.negf %82 : vector<1x32xf32>
    %84 = math.exp %83 : vector<1x32xf32>
    %cst_26 = arith.constant 1.000000e+00 : f32
    %85 = vector.broadcast %cst_26 : f32 to vector<1x32xf32>
    %86 = arith.addf %85, %84 : vector<1x32xf32>
    %87 = arith.divf %85, %86 : vector<1x32xf32>
    %88 = vector.extract_strided_slice %75 {offsets = [0, 64], sizes = [1, 32], strides = [1, 1]} : vector<1x128xf32> to vector<1x32xf32>
    %89 = math.tanh %88 : vector<1x32xf32>
    %90 = vector.extract_strided_slice %75 {offsets = [0, 96], sizes = [1, 32], strides = [1, 1]} : vector<1x128xf32> to vector<1x32xf32>
    %91 = arith.negf %90 : vector<1x32xf32>
    %92 = math.exp %91 : vector<1x32xf32>
    %cst_27 = arith.constant 1.000000e+00 : f32
    %93 = vector.broadcast %cst_27 : f32 to vector<1x32xf32>
    %94 = arith.addf %93, %92 : vector<1x32xf32>
    %95 = arith.divf %93, %94 : vector<1x32xf32>
    %96 = arith.mulf %87, %67 : vector<1x32xf32>
    %97 = arith.mulf %81, %89 : vector<1x32xf32>
    %98 = arith.addf %96, %97 : vector<1x32xf32>
    %99 = math.tanh %98 : vector<1x32xf32>
    %100 = arith.mulf %95, %99 : vector<1x32xf32>
    %101 = arith.index_cast %c2_i32 : i32 to index
    %c0_28 = arith.constant 0 : index
    %102 = vector.load %arg7[%101, %c0_28] : memref<8x32xf32, #tpu.memory_space<vmem>>, vector<1x32xf32>
    tpu.vector_store %arg7[%101, %c0_28], %100 {strides = array<i32>} : memref<8x32xf32, #tpu.memory_space<vmem>>, vector<1x32xf32>,
    %c3_i32 = arith.constant 3 : i32
    %103 = arith.index_cast %c3_i32 : i32 to index
    %c0_29 = arith.constant 0 : index
    %104 = vector.load %arg8[%103, %c0_29] : memref<8x128xf32, #tpu.memory_space<vmem>>, vector<1x128xf32>
    %cst_30 = arith.constant dense<0.000000e+00> : vector<1x128xf32>
    %105 = tpu.matmul %100, %7, %cst_30 {dimension_numbers = #tpu.dot_dimension_numbers<[1], [0], [0], [1], [0, 0, 1, 1], [], []>} : vector<1x32xf32>, vector<32x128xf32>, vector<1x128xf32> -> vector<1x128xf32>
    %106 = arith.addf %104, %105 : vector<1x128xf32>
    %107 = vector.extract_strided_slice %106 {offsets = [0, 0], sizes = [1, 32], strides = [1, 1]} : vector<1x128xf32> to vector<1x32xf32>
    %108 = arith.negf %107 : vector<1x32xf32>
    %109 = math.exp %108 : vector<1x32xf32>
    %cst_31 = arith.constant 1.000000e+00 : f32
    %110 = vector.broadcast %cst_31 : f32 to vector<1x32xf32>
    %111 = arith.addf %110, %109 : vector<1x32xf32>
    %112 = arith.divf %110, %111 : vector<1x32xf32>
    %113 = vector.extract_strided_slice %106 {offsets = [0, 32], sizes = [1, 32], strides = [1, 1]} : vector<1x128xf32> to vector<1x32xf32>
    %114 = arith.negf %113 : vector<1x32xf32>
    %115 = math.exp %114 : vector<1x32xf32>
    %cst_32 = arith.constant 1.000000e+00 : f32
    %116 = vector.broadcast %cst_32 : f32 to vector<1x32xf32>
    %117 = arith.addf %116, %115 : vector<1x32xf32>
    %118 = arith.divf %116, %117 : vector<1x32xf32>
    %119 = vector.extract_strided_slice %106 {offsets = [0, 64], sizes = [1, 32], strides = [1, 1]} : vector<1x128xf32> to vector<1x32xf32>
    %120 = math.tanh %119 : vector<1x32xf32>
    %121 = vector.extract_strided_slice %106 {offsets = [0, 96], sizes = [1, 32], strides = [1, 1]} : vector<1x128xf32> to vector<1x32xf32>
    %122 = arith.negf %121 : vector<1x32xf32>
    %123 = math.exp %122 : vector<1x32xf32>
    %cst_33 = arith.constant 1.000000e+00 : f32
    %124 = vector.broadcast %cst_33 : f32 to vector<1x32xf32>
    %125 = arith.addf %124, %123 : vector<1x32xf32>
    %126 = arith.divf %124, %125 : vector<1x32xf32>
    %127 = arith.mulf %118, %98 : vector<1x32xf32>
    %128 = arith.mulf %112, %120 : vector<1x32xf32>
    %129 = arith.addf %127, %128 : vector<1x32xf32>
    %130 = math.tanh %129 : vector<1x32xf32>
    %131 = arith.mulf %126, %130 : vector<1x32xf32>
    %132 = arith.index_cast %c3_i32 : i32 to index
    %c0_34 = arith.constant 0 : index
    %133 = vector.load %arg7[%132, %c0_34] : memref<8x32xf32, #tpu.memory_space<vmem>>, vector<1x32xf32>
    tpu.vector_store %arg7[%132, %c0_34], %131 {strides = array<i32>} : memref<8x32xf32, #tpu.memory_space<vmem>>, vector<1x32xf32>,
    %c4_i32 = arith.constant 4 : i32
    %134 = arith.index_cast %c4_i32 : i32 to index
    %c0_35 = arith.constant 0 : index
    %135 = vector.load %arg8[%134, %c0_35] : memref<8x128xf32, #tpu.memory_space<vmem>>, vector<1x128xf32>
    %cst_36 = arith.constant dense<0.000000e+00> : vector<1x128xf32>
    %136 = tpu.matmul %131, %7, %cst_36 {dimension_numbers = #tpu.dot_dimension_numbers<[1], [0], [0], [1], [0, 0, 1, 1], [], []>} : vector<1x32xf32>, vector<32x128xf32>, vector<1x128xf32> -> vector<1x128xf32>
    %137 = arith.addf %135, %136 : vector<1x128xf32>
    %138 = vector.extract_strided_slice %137 {offsets = [0, 0], sizes = [1, 32], strides = [1, 1]} : vector<1x128xf32> to vector<1x32xf32>
    %139 = arith.negf %138 : vector<1x32xf32>
    %140 = math.exp %139 : vector<1x32xf32>
    %cst_37 = arith.constant 1.000000e+00 : f32
    %141 = vector.broadcast %cst_37 : f32 to vector<1x32xf32>
    %142 = arith.addf %141, %140 : vector<1x32xf32>
    %143 = arith.divf %141, %142 : vector<1x32xf32>
    %144 = vector.extract_strided_slice %137 {offsets = [0, 32], sizes = [1, 32], strides = [1, 1]} : vector<1x128xf32> to vector<1x32xf32>
    %145 = arith.negf %144 : vector<1x32xf32>
    %146 = math.exp %145 : vector<1x32xf32>
    %cst_38 = arith.constant 1.000000e+00 : f32
    %147 = vector.broadcast %cst_38 : f32 to vector<1x32xf32>
    %148 = arith.addf %147, %146 : vector<1x32xf32>
    %149 = arith.divf %147, %148 : vector<1x32xf32>
    %150 = vector.extract_strided_slice %137 {offsets = [0, 64], sizes = [1, 32], strides = [1, 1]} : vector<1x128xf32> to vector<1x32xf32>
    %151 = math.tanh %150 : vector<1x32xf32>
    %152 = vector.extract_strided_slice %137 {offsets = [0, 96], sizes = [1, 32], strides = [1, 1]} : vector<1x128xf32> to vector<1x32xf32>
    %153 = arith.negf %152 : vector<1x32xf32>
    %154 = math.exp %153 : vector<1x32xf32>
    %cst_39 = arith.constant 1.000000e+00 : f32
    %155 = vector.broadcast %cst_39 : f32 to vector<1x32xf32>
    %156 = arith.addf %155, %154 : vector<1x32xf32>
    %157 = arith.divf %155, %156 : vector<1x32xf32>
    %158 = arith.mulf %149, %129 : vector<1x32xf32>
    %159 = arith.mulf %143, %151 : vector<1x32xf32>
    %160 = arith.addf %158, %159 : vector<1x32xf32>
    %161 = math.tanh %160 : vector<1x32xf32>
    %162 = arith.mulf %157, %161 : vector<1x32xf32>
    %163 = arith.index_cast %c4_i32 : i32 to index
    %c0_40 = arith.constant 0 : index
    %164 = vector.load %arg7[%163, %c0_40] : memref<8x32xf32, #tpu.memory_space<vmem>>, vector<1x32xf32>
    tpu.vector_store %arg7[%163, %c0_40], %162 {strides = array<i32>} : memref<8x32xf32, #tpu.memory_space<vmem>>, vector<1x32xf32>,
    %c5_i32 = arith.constant 5 : i32
    %165 = arith.index_cast %c5_i32 : i32 to index
    %c0_41 = arith.constant 0 : index
    %166 = vector.load %arg8[%165, %c0_41] : memref<8x128xf32, #tpu.memory_space<vmem>>, vector<1x128xf32>
    %cst_42 = arith.constant dense<0.000000e+00> : vector<1x128xf32>
    %167 = tpu.matmul %162, %7, %cst_42 {dimension_numbers = #tpu.dot_dimension_numbers<[1], [0], [0], [1], [0, 0, 1, 1], [], []>} : vector<1x32xf32>, vector<32x128xf32>, vector<1x128xf32> -> vector<1x128xf32>
    %168 = arith.addf %166, %167 : vector<1x128xf32>
    %169 = vector.extract_strided_slice %168 {offsets = [0, 0], sizes = [1, 32], strides = [1, 1]} : vector<1x128xf32> to vector<1x32xf32>
    %170 = arith.negf %169 : vector<1x32xf32>
    %171 = math.exp %170 : vector<1x32xf32>
    %cst_43 = arith.constant 1.000000e+00 : f32
    %172 = vector.broadcast %cst_43 : f32 to vector<1x32xf32>
    %173 = arith.addf %172, %171 : vector<1x32xf32>
    %174 = arith.divf %172, %173 : vector<1x32xf32>
    %175 = vector.extract_strided_slice %168 {offsets = [0, 32], sizes = [1, 32], strides = [1, 1]} : vector<1x128xf32> to vector<1x32xf32>
    %176 = arith.negf %175 : vector<1x32xf32>
    %177 = math.exp %176 : vector<1x32xf32>
    %cst_44 = arith.constant 1.000000e+00 : f32
    %178 = vector.broadcast %cst_44 : f32 to vector<1x32xf32>
    %179 = arith.addf %178, %177 : vector<1x32xf32>
    %180 = arith.divf %178, %179 : vector<1x32xf32>
    %181 = vector.extract_strided_slice %168 {offsets = [0, 64], sizes = [1, 32], strides = [1, 1]} : vector<1x128xf32> to vector<1x32xf32>
    %182 = math.tanh %181 : vector<1x32xf32>
    %183 = vector.extract_strided_slice %168 {offsets = [0, 96], sizes = [1, 32], strides = [1, 1]} : vector<1x128xf32> to vector<1x32xf32>
    %184 = arith.negf %183 : vector<1x32xf32>
    %185 = math.exp %184 : vector<1x32xf32>
    %cst_45 = arith.constant 1.000000e+00 : f32
    %186 = vector.broadcast %cst_45 : f32 to vector<1x32xf32>
    %187 = arith.addf %186, %185 : vector<1x32xf32>
    %188 = arith.divf %186, %187 : vector<1x32xf32>
    %189 = arith.mulf %180, %160 : vector<1x32xf32>
    %190 = arith.mulf %174, %182 : vector<1x32xf32>
    %191 = arith.addf %189, %190 : vector<1x32xf32>
    %192 = math.tanh %191 : vector<1x32xf32>
    %193 = arith.mulf %188, %192 : vector<1x32xf32>
    %194 = arith.index_cast %c5_i32 : i32 to index
    %c0_46 = arith.constant 0 : index
    %195 = vector.load %arg7[%194, %c0_46] : memref<8x32xf32, #tpu.memory_space<vmem>>, vector<1x32xf32>
    tpu.vector_store %arg7[%194, %c0_46], %193 {strides = array<i32>} : memref<8x32xf32, #tpu.memory_space<vmem>>, vector<1x32xf32>,
    %c6_i32 = arith.constant 6 : i32
    %196 = arith.index_cast %c6_i32 : i32 to index
    %c0_47 = arith.constant 0 : index
    %197 = vector.load %arg8[%196, %c0_47] : memref<8x128xf32, #tpu.memory_space<vmem>>, vector<1x128xf32>
    %cst_48 = arith.constant dense<0.000000e+00> : vector<1x128xf32>
    %198 = tpu.matmul %193, %7, %cst_48 {dimension_numbers = #tpu.dot_dimension_numbers<[1], [0], [0], [1], [0, 0, 1, 1], [], []>} : vector<1x32xf32>, vector<32x128xf32>, vector<1x128xf32> -> vector<1x128xf32>
    %199 = arith.addf %197, %198 : vector<1x128xf32>
    %200 = vector.extract_strided_slice %199 {offsets = [0, 0], sizes = [1, 32], strides = [1, 1]} : vector<1x128xf32> to vector<1x32xf32>
    %201 = arith.negf %200 : vector<1x32xf32>
    %202 = math.exp %201 : vector<1x32xf32>
    %cst_49 = arith.constant 1.000000e+00 : f32
    %203 = vector.broadcast %cst_49 : f32 to vector<1x32xf32>
    %204 = arith.addf %203, %202 : vector<1x32xf32>
    %205 = arith.divf %203, %204 : vector<1x32xf32>
    %206 = vector.extract_strided_slice %199 {offsets = [0, 32], sizes = [1, 32], strides = [1, 1]} : vector<1x128xf32> to vector<1x32xf32>
    %207 = arith.negf %206 : vector<1x32xf32>
    %208 = math.exp %207 : vector<1x32xf32>
    %cst_50 = arith.constant 1.000000e+00 : f32
    %209 = vector.broadcast %cst_50 : f32 to vector<1x32xf32>
    %210 = arith.addf %209, %208 : vector<1x32xf32>
    %211 = arith.divf %209, %210 : vector<1x32xf32>
    %212 = vector.extract_strided_slice %199 {offsets = [0, 64], sizes = [1, 32], strides = [1, 1]} : vector<1x128xf32> to vector<1x32xf32>
    %213 = math.tanh %212 : vector<1x32xf32>
    %214 = vector.extract_strided_slice %199 {offsets = [0, 96], sizes = [1, 32], strides = [1, 1]} : vector<1x128xf32> to vector<1x32xf32>
    %215 = arith.negf %214 : vector<1x32xf32>
    %216 = math.exp %215 : vector<1x32xf32>
    %cst_51 = arith.constant 1.000000e+00 : f32
    %217 = vector.broadcast %cst_51 : f32 to vector<1x32xf32>
    %218 = arith.addf %217, %216 : vector<1x32xf32>
    %219 = arith.divf %217, %218 : vector<1x32xf32>
    %220 = arith.mulf %211, %191 : vector<1x32xf32>
    %221 = arith.mulf %205, %213 : vector<1x32xf32>
    %222 = arith.addf %220, %221 : vector<1x32xf32>
    %223 = math.tanh %222 : vector<1x32xf32>
    %224 = arith.mulf %219, %223 : vector<1x32xf32>
    %225 = arith.index_cast %c6_i32 : i32 to index
    %c0_52 = arith.constant 0 : index
    %226 = vector.load %arg7[%225, %c0_52] : memref<8x32xf32, #tpu.memory_space<vmem>>, vector<1x32xf32>
    tpu.vector_store %arg7[%225, %c0_52], %224 {strides = array<i32>} : memref<8x32xf32, #tpu.memory_space<vmem>>, vector<1x32xf32>,
    %c7_i32 = arith.constant 7 : i32
    %227 = arith.index_cast %c7_i32 : i32 to index
    %c0_53 = arith.constant 0 : index
    %228 = vector.load %arg8[%227, %c0_53] : memref<8x128xf32, #tpu.memory_space<vmem>>, vector<1x128xf32>
    %cst_54 = arith.constant dense<0.000000e+00> : vector<1x128xf32>
    %229 = tpu.matmul %224, %7, %cst_54 {dimension_numbers = #tpu.dot_dimension_numbers<[1], [0], [0], [1], [0, 0, 1, 1], [], []>} : vector<1x32xf32>, vector<32x128xf32>, vector<1x128xf32> -> vector<1x128xf32>
    %230 = arith.addf %228, %229 : vector<1x128xf32>
    %231 = vector.extract_strided_slice %230 {offsets = [0, 0], sizes = [1, 32], strides = [1, 1]} : vector<1x128xf32> to vector<1x32xf32>
    %232 = arith.negf %231 : vector<1x32xf32>
    %233 = math.exp %232 : vector<1x32xf32>
    %cst_55 = arith.constant 1.000000e+00 : f32
    %234 = vector.broadcast %cst_55 : f32 to vector<1x32xf32>
    %235 = arith.addf %234, %233 : vector<1x32xf32>
    %236 = arith.divf %234, %235 : vector<1x32xf32>
    %237 = vector.extract_strided_slice %230 {offsets = [0, 32], sizes = [1, 32], strides = [1, 1]} : vector<1x128xf32> to vector<1x32xf32>
    %238 = arith.negf %237 : vector<1x32xf32>
    %239 = math.exp %238 : vector<1x32xf32>
    %cst_56 = arith.constant 1.000000e+00 : f32
    %240 = vector.broadcast %cst_56 : f32 to vector<1x32xf32>
    %241 = arith.addf %240, %239 : vector<1x32xf32>
    %242 = arith.divf %240, %241 : vector<1x32xf32>
    %243 = vector.extract_strided_slice %230 {offsets = [0, 64], sizes = [1, 32], strides = [1, 1]} : vector<1x128xf32> to vector<1x32xf32>
    %244 = math.tanh %243 : vector<1x32xf32>
    %245 = vector.extract_strided_slice %230 {offsets = [0, 96], sizes = [1, 32], strides = [1, 1]} : vector<1x128xf32> to vector<1x32xf32>
    %246 = arith.negf %245 : vector<1x32xf32>
    %247 = math.exp %246 : vector<1x32xf32>
    %cst_57 = arith.constant 1.000000e+00 : f32
    %248 = vector.broadcast %cst_57 : f32 to vector<1x32xf32>
    %249 = arith.addf %248, %247 : vector<1x32xf32>
    %250 = arith.divf %248, %249 : vector<1x32xf32>
    %251 = arith.mulf %242, %222 : vector<1x32xf32>
    %252 = arith.mulf %236, %244 : vector<1x32xf32>
    %253 = arith.addf %251, %252 : vector<1x32xf32>
    %254 = math.tanh %253 : vector<1x32xf32>
    %255 = arith.mulf %250, %254 : vector<1x32xf32>
    %256 = arith.index_cast %c7_i32 : i32 to index
    %c0_58 = arith.constant 0 : index
    %257 = vector.load %arg7[%256, %c0_58] : memref<8x32xf32, #tpu.memory_space<vmem>>, vector<1x32xf32>
    tpu.vector_store %arg7[%256, %c0_58], %255 {strides = array<i32>} : memref<8x32xf32, #tpu.memory_space<vmem>>, vector<1x32xf32>,
    %c8_i32 = arith.constant 8 : i32
    %c0_59 = arith.constant 0 : index
    %c0_60 = arith.constant 0 : index
    %258 = vector.load %arg7[%c0_59, %c0_60] : memref<8x32xf32, #tpu.memory_space<vmem>>, vector<8x32xf32>
    %c0_61 = arith.constant 0 : index
    %c0_62 = arith.constant 0 : index
    %259 = vector.load %arg4[%c0_61, %c0_62] : memref<32x8xf32, #tpu.memory_space<vmem>>, vector<32x8xf32>
    %cst_63 = arith.constant dense<0.000000e+00> : vector<8x8xf32>
    %260 = tpu.matmul %258, %259, %cst_63 {dimension_numbers = #tpu.dot_dimension_numbers<[1], [0], [0], [1], [0, 0, 1, 1], [], []>} : vector<8x32xf32>, vector<32x8xf32>, vector<8x8xf32> -> vector<8x8xf32>
    %c0_64 = arith.constant 0 : index
    %c0_65 = arith.constant 0 : index
    %261 = vector.load %arg5[%c0_64, %c0_65] : memref<1x8xf32, #tpu.memory_space<vmem>>, vector<1x8xf32>
    %262 = vector.broadcast %261 : vector<1x8xf32> to vector<8x8xf32>
    %263 = arith.addf %260, %262 : vector<8x8xf32>
    %cst_66 = arith.constant dense<0xFF800000> : vector<8xf32>
    %264 = vector.multi_reduction <maximumf>, %263, %cst_66 [1] : vector<8x8xf32> to vector<8xf32>
    %265 = vector.shape_cast %264 : vector<8xf32> to vector<8x1xf32>
    %266 = vector.broadcast %265 : vector<8x1xf32> to vector<8x8xf32>
    %267 = arith.subf %263, %266 : vector<8x8xf32>
    %268 = math.exp %267 : vector<8x8xf32>
    %cst_67 = arith.constant dense<0.000000e+00> : vector<8xf32>
    %269 = vector.multi_reduction <add>, %268, %cst_67 [1] : vector<8x8xf32> to vector<8xf32>
    %270 = vector.shape_cast %269 : vector<8xf32> to vector<8x1xf32>
    %271 = math.log %270 : vector<8x1xf32>
    %272 = vector.broadcast %271 : vector<8x1xf32> to vector<8x8xf32>
    %273 = arith.subf %267, %272 : vector<8x8xf32>
    %c0_68 = arith.constant 0 : index
    %c0_69 = arith.constant 0 : index
    %274 = vector.load %arg6[%c0_68, %c0_69] : memref<8x8xf32, #tpu.memory_space<vmem>>, vector<8x8xf32>
    tpu.vector_store %arg6[%c0_68, %c0_69], %273 {strides = array<i32>} : memref<8x8xf32, #tpu.memory_space<vmem>>, vector<8x8xf32>,
    return
  }
}

</mosaic_0001>

<llo_original>
// kernel: tpu_custom_call.1
$region0: #{tpu_custom_call.1}
  #allocation0 [shape = 'u32[]', space=smem, size = 0x4, offset = 0x4, fixed_abs, tag = 'smem constant byte address 0x4 - core index']
  #allocation1 [shape = 'u32[72,128]{1,0:T(1,128)}', space=vmem, size = 0x9000, scoped, tag = 'internal scratch']
  #allocation2 [shape = 'f32[8,32]{1,0:T(8,128)}', space=vmem, size = 0x1000, scoped, tag = 'scratch operand']
  #allocation3 [shape = 'f32[8,128]{1,0:T(8,128)}', space=vmem, size = 0x1000, scoped, tag = 'scratch operand']
  %s0 = inlined_call_operand.vmem [shape: f32[8,32], index: 0, kind: input, shape index: {}]
  %s1 = inlined_call_operand.vmem [shape: f32[32,128], index: 1, kind: input, shape index: {}]
  %s2 = inlined_call_operand.hbm [shape: f32[32,128], index: 2, kind: input, shape index: {}]
  %s3 = inlined_call_operand.vmem [shape: f32[1,128], index: 3, kind: input, shape index: {}]
  %s4 = inlined_call_operand.vmem [shape: f32[32,8], index: 4, kind: input, shape index: {}]
  %s5 = inlined_call_operand.vmem [shape: f32[1,8], index: 5, kind: input, shape index: {}]
  %s6 = inlined_call_operand.hbm [shape: f32[8,8], index: 6, kind: output, shape index: {}]
  %s7 = sld [smem:[#allocation0]]
  $region38: #{tpu_custom_call.1} parent=0
    _
  %s9 = ssub.s32 1, %s7
  %s10 = scalar_select 0, %s9, %s7
  $region1: #{tpu_custom_call.1} parent=0
    #allocation4 [shape = 'u8[16384]{0}', space=vmem, size = 0x4000, scoped, tag = 'input window, operand 2, single buffered']
    #allocation5 [shape = 's32[1]{0}', space=sflag, size = 0x4, scoped, tag = 'scoped memory for tpu_custom_call.1']
    #allocation6 [shape = 's32[1]{0}', space=sflag, size = 0x4, scoped, tag = 'scoped memory for tpu_custom_call.1']
    #allocation7 [shape = 'u8[4096]{0}', space=vmem, size = 0x1000, scoped, tag = 'output window, operand 0, single buffered']
    %11 = vsyncpa [#allocation5], 0
    %12 = vsyncpa [#allocation6], 0
    // Predicated region
    $region2: #{tpu_custom_call.1} parent=1 // pred_check
      _
    $region3: #{tpu_custom_call.1} parent=1 // pred_check_branch
      %14 = sbr.rel (0) target = $region5
    $region4: #{tpu_custom_call.1} parent=1 // pred_region
      _
    $region5: #{tpu_custom_call.1} parent=1 // pred_fallthru
      _
    // Predicated region
    $region6: #{tpu_custom_call.1} parent=1 // pred_check
      _
    $region7: #{tpu_custom_call.1} parent=1 // pred_check_branch
      %16 = sbr.rel (0) target = $region9
    $region8: #{tpu_custom_call.1} parent=1 // pred_region
      _
    $region9: #{tpu_custom_call.1} parent=1 // pred_fallthru
      _
    // Predicated region
    $region10: #{tpu_custom_call.1} parent=1 // pred_check
      _
    $region11: #{tpu_custom_call.1} parent=1 // pred_check_branch
      %18 = sbr.rel (0) target = $region13
    $region12: #{tpu_custom_call.1} parent=1 // pred_region
      %20 = vsyncadd [#allocation5], 0
      %s21 = sshll.u32 %s2, 4
      %s22 = int_to_ptr.hbm [resolvable:$true] %s21
      %s23 = sshll.u32 [#allocation4], 4
      %s24 = int_to_ptr.vmem [resolvable:$true] %s23
      %29 = dma.hbm_to_vmem [thread:$0]  %s22, 512, %s24, [#allocation5], 128, 128, 8
    $region13: #{tpu_custom_call.1} parent=1 // pred_fallthru
      _
    // Predicated region
    $region14: #{tpu_custom_call.1} parent=1 // pred_check
      _
    $region15: #{tpu_custom_call.1} parent=1 // pred_check_branch
      %31 = sbr.rel (0) target = $region17
    $region16: #{tpu_custom_call.1} parent=1 // pred_region
      _
    $region17: #{tpu_custom_call.1} parent=1 // pred_fallthru
      _
    // Predicated region
    $region18: #{tpu_custom_call.1} parent=1 // pred_check
      _
    $region19: #{tpu_custom_call.1} parent=1 // pred_check_branch
      %33 = sbr.rel (0) target = $region21
    $region20: #{tpu_custom_call.1} parent=1 // pred_region
      _
    $region21: #{tpu_custom_call.1} parent=1 // pred_fallthru
      _
    // Predicated region
    $region22: #{tpu_custom_call.1} parent=1 // pred_check
      _
    $region23: #{tpu_custom_call.1} parent=1 // pred_check_branch
      %35 = sbr.rel (0) target = $region25
    $region24: #{tpu_custom_call.1} parent=1 // pred_region
      _
    $region25: #{tpu_custom_call.1} parent=1 // pred_fallthru
      _
    // Predicated region
    $region26: #{tpu_custom_call.1} parent=1 // pred_check
      _
    $region27: #{tpu_custom_call.1} parent=1 // pred_check_branch
      %37 = sbr.rel (0) target = $region29
    $region28: #{tpu_custom_call.1} parent=1 // pred_region
      %39 = dma.done [#allocation5], 512
    $region29: #{tpu_custom_call.1} parent=1 // pred_fallthru
      _
    %v40 = vld [vmem:[%s0] sm:$0xff]
    %v41 = vld [vmem:[%s1] sm:$0xff]
    %v42 = vld [vmem:[%s1 + $0x8] sm:$0xff]
    %v43 = vld [vmem:[%s1 + $0x10] sm:$0xff]
    %v44 = vld [vmem:[%s1 + $0x18] sm:$0xff]
    %v45 = vld [vmem:[%s3] sm:$0x1]
    %v47 = vperm.slane %v45, 0
    %vm49 = vcmask 261120
    %v51 = vsel %vm49, %v40, 0
    %53 = vmatpush.msra.mxu0 0.0
    %54 = vmatpush.msra.mxu0 0.0
    %55 = vmatpush.msra.mxu0 0.0
    %56 = vmatpush.msra.mxu0 0.0
    %57 = vmatpush.msra.mxu0 0.0
    %58 = vmatpush.msra.mxu0 0.0
    %59 = vmatpush.msra.mxu0 0.0
    %60 = vmatpush.msra.mxu0 0.0
    %61 = vmatpush.msra.mxu0 0.0
    %62 = vmatpush.msra.mxu0 0.0
    %63 = vmatpush.msra.mxu0 0.0
    %64 = vmatpush.msra.mxu0 0.0
    %65 = vmatpush.msra.mxu0 %v44
    %66 = vmatpush.msra.mxu0 %v43
    %67 = vmatpush.msra.mxu0 %v42
    %68 = vmatpush.msra.mxu0 %v41
    %69 = vmatmul.f32.gmra.mxu0 %v51
    %v70 = vpop.f32.mrf.mxu0
    %v71 = vadd.f32 %v47, %v70
    %72 = vdwg.mxu0
    %73 = vst [vmem:[#allocation3] sm:$0xff] %v71
    %v74 = vld [vmem:[#allocation4] sm:$0xff]
    %v75 = vld [vmem:[#allocation4 + $0x8] sm:$0xff]
    %v76 = vld [vmem:[#allocation4 + $0x10] sm:$0xff]
    %v77 = vld [vmem:[#allocation4 + $0x18] sm:$0xff]
    %v78 = vld [vmem:[#allocation3] sm:$0x1]
    %v80 = vsel %vm49, 0.0, 0
    %82 = vmatpush.msra.mxu0 0.0
    %83 = vmatpush.msra.mxu0 0.0
    %84 = vmatpush.msra.mxu0 0.0
    %85 = vmatpush.msra.mxu0 0.0
    %86 = vmatpush.msra.mxu0 0.0
    %87 = vmatpush.msra.mxu0 0.0
    %88 = vmatpush.msra.mxu0 0.0
    %89 = vmatpush.msra.mxu0 0.0
    %90 = vmatpush.msra.mxu0 0.0
    %91 = vmatpush.msra.mxu0 0.0
    %92 = vmatpush.msra.mxu0 0.0
    %93 = vmatpush.msra.mxu0 0.0
    %94 = vmatpush.msra.mxu0 %v77
    %95 = vmatpush.msra.mxu0 %v76
    %96 = vmatpush.msra.mxu0 %v75
    %97 = vmatpush.msra.mxu0 %v74
    %98 = vmatmul.f32.gmra.mxu0 %v80
    %v99 = vpop.f32.mrf.mxu0
    %v100 = vadd.f32 0.0, %v99
    %101 = vdwg.mxu0
    %v102 = vadd.f32 %v78, %v100
    %v103 = vxor.u32 %v102, 2147483648
    %v104 = vmul.f32 %v103, 1.442695
    %v105 = vpow.pop %v104
    %v106 = vadd.f32 %v105, 1.0
    %v107 = vrcp.pop %v106
    %v108 = vmul.f32 %v106, %v107
    %v109 = vsub.f32 1.0, %v108
    %v110 = vmul.f32 %v107, %v109
    %v111 = vadd.f32 %v107, %v110
    %vm112 = vweird.f32 %v106
    %vm113 = vweird.f32 %v107
    %vm114 = vmor %vm112, %vm113
    %v115 = vsel %vm114, %v107, %v111
    %v116 = vand.u32 2147483647, %v106
    %vm117 = vcmp.eq.f32.partialorder %v116, 8.507059e+37
    %v118 = vand.u32 %v106, 2147483648
    %v119 = vor.u32 1.1754944e-38, %v118
    %v120 = vsel %vm117, %v119, %v115
    %v121 = vmul.f32 1.0, %v120
    %v122 = vtanh.pop %v102
    %v123 = vmul.f32 %v121, 0.0
    %125 = vrot.lane.b32.xlu0 %v122, 64
    %v126 = vpop.permute.xlu0 %125
    %v128 = vmul.f32 %v121, %v126
    %130 = vrot.lane.b32.xlu0 %v128, 32
    %v131 = vpop.permute.xlu0 %130
    %v133 = vadd.f32 %v123, %v131
    %v134 = vtanh.pop %v133
    %136 = vrot.lane.b32.xlu0 %v134, 64
    %v137 = vpop.permute.xlu0 %136
    %v139 = vmul.f32 %v121, %v137
    %141 = vrot.lane.b32.xlu0 %v139, 32
    %v142 = vpop.permute.xlu0 %141
    %vm144 = vcmask 253952
    %145 = vst.msk [vmem:[#allocation2] sm:$0x1] %vm144, %v142
    %v146 = vld [vmem:[#allocation3 + $0x1] sm:$0x1]
    %v147 = vsel %vm49, %v142, 0
    %149 = vmatpush.msra.mxu0 0.0
    %150 = vmatpush.msra.mxu0 0.0
    %151 = vmatpush.msra.mxu0 0.0
    %152 = vmatpush.msra.mxu0 0.0
    %153 = vmatpush.msra.mxu0 0.0
    %154 = vmatpush.msra.mxu0 0.0
    %155 = vmatpush.msra.mxu0 0.0
    %156 = vmatpush.msra.mxu0 0.0
    %157 = vmatpush.msra.mxu0 0.0
    %158 = vmatpush.msra.mxu0 0.0
    %159 = vmatpush.msra.mxu0 0.0
    %160 = vmatpush.msra.mxu0 0.0
    %161 = vmatpush.msra.mxu0 %v77
    %162 = vmatpush.msra.mxu0 %v76
    %163 = vmatpush.msra.mxu0 %v75
    %164 = vmatpush.msra.mxu0 %v74
    %165 = vmatmul.f32.gmra.mxu0 %v147
    %v166 = vpop.f32.mrf.mxu0
    %v167 = vadd.f32 0.0, %v166
    %168 = vdwg.mxu0
    %v169 = vadd.f32 %v146, %v167
    %v170 = vxor.u32 %v169, 2147483648
    %v171 = vmul.f32 %v170, 1.442695
    %v172 = vpow.pop %v171
    %v173 = vadd.f32 %v172, 1.0
    %v174 = vrcp.pop %v173
    %v175 = vmul.f32 %v173, %v174
    %v176 = vsub.f32 1.0, %v175
    %v177 = vmul.f32 %v174, %v176
    %v178 = vadd.f32 %v174, %v177
    %vm179 = vweird.f32 %v173
    %vm180 = vweird.f32 %v174
    %vm181 = vmor %vm179, %vm180
    %v182 = vsel %vm181, %v174, %v178
    %v183 = vand.u32 2147483647, %v173
    %vm184 = vcmp.eq.f32.partialorder %v183, 8.507059e+37
    %v185 = vand.u32 %v173, 2147483648
    %v186 = vor.u32 1.1754944e-38, %v185
    %v187 = vsel %vm184, %v186, %v182
    %v188 = vmul.f32 1.0, %v187
    %v189 = vtanh.pop %v169
    %v190 = vmul.f32 %v188, %v133
    %192 = vrot.lane.b32.xlu0 %v189, 64
    %v193 = vpop.permute.xlu0 %192
    %v195 = vmul.f32 %v188, %v193
    %197 = vrot.lane.b32.xlu0 %v195, 32
    %v198 = vpop.permute.xlu0 %197
    %v200 = vadd.f32 %v190, %v198
    %v201 = vtanh.pop %v200
    %203 = vrot.lane.b32.xlu0 %v201, 64
    %v204 = vpop.permute.xlu0 %203
    %v206 = vmul.f32 %v188, %v204
    %208 = vrot.lane.b32.xlu0 %v206, 32
    %v209 = vpop.permute.xlu0 %208
    %211 = vst.msk [vmem:[#allocation2 + $0x1] sm:$0x1] %vm144, %v209
    %v212 = vld [vmem:[#allocation3 + $0x2] sm:$0x1]
    %v213 = vsel %vm49, %v209, 0
    %215 = vmatpush.msra.mxu0 0.0
    %216 = vmatpush.msra.mxu0 0.0
    %217 = vmatpush.msra.mxu0 0.0
    %218 = vmatpush.msra.mxu0 0.0
    %219 = vmatpush.msra.mxu0 0.0
    %220 = vmatpush.msra.mxu0 0.0
    %221 = vmatpush.msra.mxu0 0.0
    %222 = vmatpush.msra.mxu0 0.0
    %223 = vmatpush.msra.mxu0 0.0
    %224 = vmatpush.msra.mxu0 0.0
    %225 = vmatpush.msra.mxu0 0.0
    %226 = vmatpush.msra.mxu0 0.0
    %227 = vmatpush.msra.mxu0 %v77
    %228 = vmatpush.msra.mxu0 %v76
    %229 = vmatpush.msra.mxu0 %v75
    %230 = vmatpush.msra.mxu0 %v74
    %231 = vmatmul.f32.gmra.mxu0 %v213
    %v232 = vpop.f32.mrf.mxu0
    %v233 = vadd.f32 0.0, %v232
    %234 = vdwg.mxu0
    %v235 = vadd.f32 %v212, %v233
    %v236 = vxor.u32 %v235, 2147483648
    %v237 = vmul.f32 %v236, 1.442695
    %v238 = vpow.pop %v237
    %v239 = vadd.f32 %v238, 1.0
    %v240 = vrcp.pop %v239
    %v241 = vmul.f32 %v239, %v240
    %v242 = vsub.f32 1.0, %v241
    %v243 = vmul.f32 %v240, %v242
    %v244 = vadd.f32 %v240, %v243
    %vm245 = vweird.f32 %v239
    %vm246 = vweird.f32 %v240
    %vm247 = vmor %vm245, %vm246
    %v248 = vsel %vm247, %v240, %v244
    %v249 = vand.u32 2147483647, %v239
    %vm250 = vcmp.eq.f32.partialorder %v249, 8.507059e+37
    %v251 = vand.u32 %v239, 2147483648
    %v252 = vor.u32 1.1754944e-38, %v251
    %v253 = vsel %vm250, %v252, %v248
    %v254 = vmul.f32 1.0, %v253
    %v255 = vtanh.pop %v235
    %v256 = vmul.f32 %v254, %v200
    %258 = vrot.lane.b32.xlu0 %v255, 64
    %v259 = vpop.permute.xlu0 %258
    %v261 = vmul.f32 %v254, %v259
    %263 = vrot.lane.b32.xlu0 %v261, 32
    %v264 = vpop.permute.xlu0 %263
    %v266 = vadd.f32 %v256, %v264
    %v267 = vtanh.pop %v266
    %269 = vrot.lane.b32.xlu0 %v267, 64
    %v270 = vpop.permute.xlu0 %269
    %v272 = vmul.f32 %v254, %v270
    %274 = vrot.lane.b32.xlu0 %v272, 32
    %v275 = vpop.permute.xlu0 %274
    %277 = vst.msk [vmem:[#allocation2 + $0x2] sm:$0x1] %vm144, %v275
    %v278 = vld [vmem:[#allocation3 + $0x3] sm:$0x1]
    %v279 = vsel %vm49, %v275, 0
    %281 = vmatpush.msra.mxu0 0.0
    %282 = vmatpush.msra.mxu0 0.0
    %283 = vmatpush.msra.mxu0 0.0
    %284 = vmatpush.msra.mxu0 0.0
    %285 = vmatpush.msra.mxu0 0.0
    %286 = vmatpush.msra.mxu0 0.0
    %287 = vmatpush.msra.mxu0 0.0
    %288 = vmatpush.msra.mxu0 0.0
    %289 = vmatpush.msra.mxu0 0.0
    %290 = vmatpush.msra.mxu0 0.0
    %291 = vmatpush.msra.mxu0 0.0
    %292 = vmatpush.msra.mxu0 0.0
    %293 = vmatpush.msra.mxu0 %v77
    %294 = vmatpush.msra.mxu0 %v76
    %295 = vmatpush.msra.mxu0 %v75
    %296 = vmatpush.msra.mxu0 %v74
    %297 = vmatmul.f32.gmra.mxu0 %v279
    %v298 = vpop.f32.mrf.mxu0
    %v299 = vadd.f32 0.0, %v298
    %300 = vdwg.mxu0
    %v301 = vadd.f32 %v278, %v299
    %v302 = vxor.u32 %v301, 2147483648
    %v303 = vmul.f32 %v302, 1.442695
    %v304 = vpow.pop %v303
    %v305 = vadd.f32 %v304, 1.0
    %v306 = vrcp.pop %v305
    %v307 = vmul.f32 %v305, %v306
    %v308 = vsub.f32 1.0, %v307
    %v309 = vmul.f32 %v306, %v308
    %v310 = vadd.f32 %v306, %v309
    %vm311 = vweird.f32 %v305
    %vm312 = vweird.f32 %v306
    %vm313 = vmor %vm311, %vm312
    %v314 = vsel %vm313, %v306, %v310
    %v315 = vand.u32 2147483647, %v305
    %vm316 = vcmp.eq.f32.partialorder %v315, 8.507059e+37
    %v317 = vand.u32 %v305, 2147483648
    %v318 = vor.u32 1.1754944e-38, %v317
    %v319 = vsel %vm316, %v318, %v314
    %v320 = vmul.f32 1.0, %v319
    %v321 = vtanh.pop %v301
    %v322 = vmul.f32 %v320, %v266
    %324 = vrot.lane.b32.xlu0 %v321, 64
    %v325 = vpop.permute.xlu0 %324
    %v327 = vmul.f32 %v320, %v325
    %329 = vrot.lane.b32.xlu0 %v327, 32
    %v330 = vpop.permute.xlu0 %329
    %v332 = vadd.f32 %v322, %v330
    %v333 = vtanh.pop %v332
    %335 = vrot.lane.b32.xlu0 %v333, 64
    %v336 = vpop.permute.xlu0 %335
    %v338 = vmul.f32 %v320, %v336
    %340 = vrot.lane.b32.xlu0 %v338, 32
    %v341 = vpop.permute.xlu0 %340
    %343 = vst.msk [vmem:[#allocation2 + $0x3] sm:$0x1] %vm144, %v341
    %v344 = vld [vmem:[#allocation3 + $0x4] sm:$0x1]
    %v345 = vsel %vm49, %v341, 0
    %347 = vmatpush.msra.mxu0 0.0
    %348 = vmatpush.msra.mxu0 0.0
    %349 = vmatpush.msra.mxu0 0.0
    %350 = vmatpush.msra.mxu0 0.0
    %351 = vmatpush.msra.mxu0 0.0
    %352 = vmatpush.msra.mxu0 0.0
    %353 = vmatpush.msra.mxu0 0.0
    %354 = vmatpush.msra.mxu0 0.0
    %355 = vmatpush.msra.mxu0 0.0
    %356 = vmatpush.msra.mxu0 0.0
    %357 = vmatpush.msra.mxu0 0.0
    %358 = vmatpush.msra.mxu0 0.0
    %359 = vmatpush.msra.mxu0 %v77
    %360 = vmatpush.msra.mxu0 %v76
    %361 = vmatpush.msra.mxu0 %v75
    %362 = vmatpush.msra.mxu0 %v74
    %363 = vmatmul.f32.gmra.mxu0 %v345
    %v364 = vpop.f32.mrf.mxu0
    %v365 = vadd.f32 0.0, %v364
    %366 = vdwg.mxu0
    %v367 = vadd.f32 %v344, %v365
    %v368 = vxor.u32 %v367, 2147483648
    %v369 = vmul.f32 %v368, 1.442695
    %v370 = vpow.pop %v369
    %v371 = vadd.f32 %v370, 1.0
    %v372 = vrcp.pop %v371
    %v373 = vmul.f32 %v371, %v372
    %v374 = vsub.f32 1.0, %v373
    %v375 = vmul.f32 %v372, %v374
    %v376 = vadd.f32 %v372, %v375
    %vm377 = vweird.f32 %v371
    %vm378 = vweird.f32 %v372
    %vm379 = vmor %vm377, %vm378
    %v380 = vsel %vm379, %v372, %v376
    %v381 = vand.u32 2147483647, %v371
    %vm382 = vcmp.eq.f32.partialorder %v381, 8.507059e+37
    %v383 = vand.u32 %v371, 2147483648
    %v384 = vor.u32 1.1754944e-38, %v383
    %v385 = vsel %vm382, %v384, %v380
    %v386 = vmul.f32 1.0, %v385
    %v387 = vtanh.pop %v367
    %v388 = vmul.f32 %v386, %v332
    %390 = vrot.lane.b32.xlu0 %v387, 64
    %v391 = vpop.permute.xlu0 %390
    %v393 = vmul.f32 %v386, %v391
    %395 = vrot.lane.b32.xlu0 %v393, 32
    %v396 = vpop.permute.xlu0 %395
    %v398 = vadd.f32 %v388, %v396
    %v399 = vtanh.pop %v398
    %401 = vrot.lane.b32.xlu0 %v399, 64
    %v402 = vpop.permute.xlu0 %401
    %v404 = vmul.f32 %v386, %v402
    %406 = vrot.lane.b32.xlu0 %v404, 32
    %v407 = vpop.permute.xlu0 %406
    %409 = vst.msk [vmem:[#allocation2 + $0x4] sm:$0x1] %vm144, %v407
    %v410 = vld [vmem:[#allocation3 + $0x5] sm:$0x1]
    %v411 = vsel %vm49, %v407, 0
    %413 = vmatpush.msra.mxu0 0.0
    %414 = vmatpush.msra.mxu0 0.0
    %415 = vmatpush.msra.mxu0 0.0
    %416 = vmatpush.msra.mxu0 0.0
    %417 = vmatpush.msra.mxu0 0.0
    %418 = vmatpush.msra.mxu0 0.0
    %419 = vmatpush.msra.mxu0 0.0
    %420 = vmatpush.msra.mxu0 0.0
    %421 = vmatpush.msra.mxu0 0.0
    %422 = vmatpush.msra.mxu0 0.0
    %423 = vmatpush.msra.mxu0 0.0
    %424 = vmatpush.msra.mxu0 0.0
    %425 = vmatpush.msra.mxu0 %v77
    %426 = vmatpush.msra.mxu0 %v76
    %427 = vmatpush.msra.mxu0 %v75
    %428 = vmatpush.msra.mxu0 %v74
    %429 = vmatmul.f32.gmra.mxu0 %v411
    %v430 = vpop.f32.mrf.mxu0
    %v431 = vadd.f32 0.0, %v430
    %432 = vdwg.mxu0
    %v433 = vadd.f32 %v410, %v431
    %v434 = vxor.u32 %v433, 2147483648
    %v435 = vmul.f32 %v434, 1.442695
    %v436 = vpow.pop %v435
    %v437 = vadd.f32 %v436, 1.0
    %v438 = vrcp.pop %v437
    %v439 = vmul.f32 %v437, %v438
    %v440 = vsub.f32 1.0, %v439
    %v441 = vmul.f32 %v438, %v440
    %v442 = vadd.f32 %v438, %v441
    %vm443 = vweird.f32 %v437
    %vm444 = vweird.f32 %v438
    %vm445 = vmor %vm443, %vm444
    %v446 = vsel %vm445, %v438, %v442
    %v447 = vand.u32 2147483647, %v437
    %vm448 = vcmp.eq.f32.partialorder %v447, 8.507059e+37
    %v449 = vand.u32 %v437, 2147483648
    %v450 = vor.u32 1.1754944e-38, %v449
    %v451 = vsel %vm448, %v450, %v446
    %v452 = vmul.f32 1.0, %v451
    %v453 = vtanh.pop %v433
    %v454 = vmul.f32 %v452, %v398
    %456 = vrot.lane.b32.xlu0 %v453, 64
    %v457 = vpop.permute.xlu0 %456
    %v459 = vmul.f32 %v452, %v457
    %461 = vrot.lane.b32.xlu0 %v459, 32
    %v462 = vpop.permute.xlu0 %461
    %v464 = vadd.f32 %v454, %v462
    %v465 = vtanh.pop %v464
    %467 = vrot.lane.b32.xlu0 %v465, 64
    %v468 = vpop.permute.xlu0 %467
    %v470 = vmul.f32 %v452, %v468
    %472 = vrot.lane.b32.xlu0 %v470, 32
    %v473 = vpop.permute.xlu0 %472
    %475 = vst.msk [vmem:[#allocation2 + $0x5] sm:$0x1] %vm144, %v473
    %v476 = vld [vmem:[#allocation3 + $0x6] sm:$0x1]
    %v477 = vsel %vm49, %v473, 0
    %479 = vmatpush.msra.mxu0 0.0
    %480 = vmatpush.msra.mxu0 0.0
    %481 = vmatpush.msra.mxu0 0.0
    %482 = vmatpush.msra.mxu0 0.0
    %483 = vmatpush.msra.mxu0 0.0
    %484 = vmatpush.msra.mxu0 0.0
    %485 = vmatpush.msra.mxu0 0.0
    %486 = vmatpush.msra.mxu0 0.0
    %487 = vmatpush.msra.mxu0 0.0
    %488 = vmatpush.msra.mxu0 0.0
    %489 = vmatpush.msra.mxu0 0.0
    %490 = vmatpush.msra.mxu0 0.0
    %491 = vmatpush.msra.mxu0 %v77
    %492 = vmatpush.msra.mxu0 %v76
    %493 = vmatpush.msra.mxu0 %v75
    %494 = vmatpush.msra.mxu0 %v74
    %495 = vmatmul.f32.gmra.mxu0 %v477
    %v496 = vpop.f32.mrf.mxu0
    %v497 = vadd.f32 0.0, %v496
    %498 = vdwg.mxu0
    %v499 = vadd.f32 %v476, %v497
    %v500 = vxor.u32 %v499, 2147483648
    %v501 = vmul.f32 %v500, 1.442695
    %v502 = vpow.pop %v501
    %v503 = vadd.f32 %v502, 1.0
    %v504 = vrcp.pop %v503
    %v505 = vmul.f32 %v503, %v504
    %v506 = vsub.f32 1.0, %v505
    %v507 = vmul.f32 %v504, %v506
    %v508 = vadd.f32 %v504, %v507
    %vm509 = vweird.f32 %v503
    %vm510 = vweird.f32 %v504
    %vm511 = vmor %vm509, %vm510
    %v512 = vsel %vm511, %v504, %v508
    %v513 = vand.u32 2147483647, %v503
    %vm514 = vcmp.eq.f32.partialorder %v513, 8.507059e+37
    %v515 = vand.u32 %v503, 2147483648
    %v516 = vor.u32 1.1754944e-38, %v515
    %v517 = vsel %vm514, %v516, %v512
    %v518 = vmul.f32 1.0, %v517
    %v519 = vtanh.pop %v499
    %v520 = vmul.f32 %v518, %v464
    %522 = vrot.lane.b32.xlu0 %v519, 64
    %v523 = vpop.permute.xlu0 %522
    %v525 = vmul.f32 %v518, %v523
    %527 = vrot.lane.b32.xlu0 %v525, 32
    %v528 = vpop.permute.xlu0 %527
    %v530 = vadd.f32 %v520, %v528
    %v531 = vtanh.pop %v530
    %533 = vrot.lane.b32.xlu0 %v531, 64
    %v534 = vpop.permute.xlu0 %533
    %v536 = vmul.f32 %v518, %v534
    %538 = vrot.lane.b32.xlu0 %v536, 32
    %v539 = vpop.permute.xlu0 %538
    %541 = vst.msk [vmem:[#allocation2 + $0x6] sm:$0x1] %vm144, %v539
    %v542 = vld [vmem:[#allocation3 + $0x7] sm:$0x1]
    %v543 = vsel %vm49, %v539, 0
    %545 = vmatpush.msra.mxu0 0.0
    %546 = vmatpush.msra.mxu0 0.0
    %547 = vmatpush.msra.mxu0 0.0
    %548 = vmatpush.msra.mxu0 0.0
    %549 = vmatpush.msra.mxu0 0.0
    %550 = vmatpush.msra.mxu0 0.0
    %551 = vmatpush.msra.mxu0 0.0
    %552 = vmatpush.msra.mxu0 0.0
    %553 = vmatpush.msra.mxu0 0.0
    %554 = vmatpush.msra.mxu0 0.0
    %555 = vmatpush.msra.mxu0 0.0
    %556 = vmatpush.msra.mxu0 0.0
    %557 = vmatpush.msra.mxu0 %v77
    %558 = vmatpush.msra.mxu0 %v76
    %559 = vmatpush.msra.mxu0 %v75
    %560 = vmatpush.msra.mxu0 %v74
    %561 = vmatmul.f32.gmra.mxu0 %v543
    %v562 = vpop.f32.mrf.mxu0
    %v563 = vadd.f32 0.0, %v562
    %564 = vdwg.mxu0
    %v565 = vadd.f32 %v542, %v563
    %v566 = vxor.u32 %v565, 2147483648
    %v567 = vmul.f32 %v566, 1.442695
    %v568 = vpow.pop %v567
    %v569 = vadd.f32 %v568, 1.0
    %v570 = vrcp.pop %v569
    %v571 = vmul.f32 %v569, %v570
    %v572 = vsub.f32 1.0, %v571
    %v573 = vmul.f32 %v570, %v572
    %v574 = vadd.f32 %v570, %v573
    %vm575 = vweird.f32 %v569
    %vm576 = vweird.f32 %v570
    %vm577 = vmor %vm575, %vm576
    %v578 = vsel %vm577, %v570, %v574
    %v579 = vand.u32 2147483647, %v569
    %vm580 = vcmp.eq.f32.partialorder %v579, 8.507059e+37
    %v581 = vand.u32 %v569, 2147483648
    %v582 = vor.u32 1.1754944e-38, %v581
    %v583 = vsel %vm580, %v582, %v578
    %v584 = vmul.f32 1.0, %v583
    %v585 = vtanh.pop %v565
    %v586 = vmul.f32 %v584, %v530
    %588 = vrot.lane.b32.xlu0 %v585, 64
    %v589 = vpop.permute.xlu0 %588
    %v591 = vmul.f32 %v584, %v589
    %593 = vrot.lane.b32.xlu0 %v591, 32
    %v594 = vpop.permute.xlu0 %593
    %v596 = vadd.f32 %v586, %v594
    %v597 = vtanh.pop %v596
    %599 = vrot.lane.b32.xlu0 %v597, 64
    %v600 = vpop.permute.xlu0 %599
    %v602 = vmul.f32 %v584, %v600
    %604 = vrot.lane.b32.xlu0 %v602, 32
    %v605 = vpop.permute.xlu0 %604
    %607 = vst.msk [vmem:[#allocation2 + $0x7] sm:$0x1] %vm144, %v605
    %v608 = vld [vmem:[#allocation2] sm:$0xff]
    %v609 = vld [vmem:[%s4] sm:$0xff]
    %v610 = vld [vmem:[%s4 + $0x8] sm:$0xff]
    %v611 = vld [vmem:[%s4 + $0x10] sm:$0xff]
    %v612 = vld [vmem:[%s4 + $0x18] sm:$0xff]
    %v613 = vld [vmem:[%s5] sm:$0x1]
    %v615 = vperm.slane %v613, 0
    %v618 = vsel %vm49, %v608, 0
    %620 = vmatpush.msra.mxu0 0.0
    %621 = vmatpush.msra.mxu0 0.0
    %622 = vmatpush.msra.mxu0 0.0
    %623 = vmatpush.msra.mxu0 0.0
    %624 = vmatpush.msra.mxu0 0.0
    %625 = vmatpush.msra.mxu0 0.0
    %626 = vmatpush.msra.mxu0 0.0
    %627 = vmatpush.msra.mxu0 0.0
    %628 = vmatpush.msra.mxu0 0.0
    %629 = vmatpush.msra.mxu0 0.0
    %630 = vmatpush.msra.mxu0 0.0
    %631 = vmatpush.msra.mxu0 0.0
    %632 = vmatpush.msra.mxu0 %v612
    %633 = vmatpush.msra.mxu0 %v611
    %634 = vmatpush.msra.mxu0 %v610
    %635 = vmatpush.msra.mxu0 %v609
    %636 = vmatmul.f32.gmra.mxu0 %v618
    %v637 = vpop.f32.mrf.mxu0
    %v638 = vadd.f32 %v615, %v637
    %639 = vdwg.mxu0
    %vm640 = vcmask 64512
    %v641 = vsel %vm640, %v638, -inf
    %642 = vmax.xlane.f32.xlu0 %v641
    %v643 = vpop.xlane.xlu0 %642
    %v644 = vsub.f32 %v638, %v643
    %v645 = vmul.f32 %v644, 1.442695
    %v646 = vpow.pop %v645
    %v647 = vsel %vm640, %v646, 0.0
    %648 = vadd.xlane.f32.xlu0 %v647
    %v649 = vpop.xlane.xlu0 %648
    %v650 = vlog2.pop %v649
    %v651 = vmul.f32 %v650, 0.6931472
    %v652 = vsub.f32 %v644, %v651
    %653 = vst.msk [vmem:[#allocation7] sm:$0xff] %vm640, %v652
    // Predicated region
    $region30: #{tpu_custom_call.1} parent=1 // pred_check
      _
    $region31: #{tpu_custom_call.1} parent=1 // pred_check_branch
      %655 = sbr.rel (0) target = $region33
    $region32: #{tpu_custom_call.1} parent=1 // pred_region
      %657 = vsyncadd [#allocation6], 0
      %s659 = sshll.u32 [#allocation7], 4
      %s660 = int_to_ptr.vmem [resolvable:$true] %s659
      %s661 = sshll.u32 %s6, 4
      %s662 = int_to_ptr.hbm [resolvable:$true] %s661
      %664 = dma.vmem_to_hbm [thread:$0]  %s660, 128, %s662, [#allocation6]
    $region33: #{tpu_custom_call.1} parent=1 // pred_fallthru
      _
    // Predicated region
    $region34: #{tpu_custom_call.1} parent=1 // pred_check
      _
    $region35: #{tpu_custom_call.1} parent=1 // pred_check_branch
      %666 = sbr.rel (0) target = $region37
    $region36: #{tpu_custom_call.1} parent=1 // pred_region
      %668 = dma.done [#allocation6], 128
    $region37: #{tpu_custom_call.1} parent=1 // pred_fallthru
      _
    %669 = vsyncpa [#allocation5], 1
    %670 = vsyncpa [#allocation6], 1

</llo_original>
